<compile_context>
chip_gen: v7x
topology: tpu7x:2x2x1
jax: 0.10.0
libtpu: 0.0.40
codegen_flags: <defaults>
</compile_context>

<pallas_src>
import functools
import math

import jax
import jax.numpy as jnp
from jax import lax
from jax.experimental import pallas as pl
from jax.experimental.pallas import tpu as pltpu

_NEG_SENTINEL = -1e30          # python float (NOT a jnp array -> no capture)
_VMEM_TILE_BUDGET = 8 << 20    # budget for stage-1 double-buffered inputs


def _round_up(x, m):
    return ((x + m - 1) // m) * m


def _sim_kernel(e1_ref, e2_ref, sim_ref, *, eps_sq):
    """Cosine similarity for one lane-major tile of pairs.

    e1_ref  : VMEM (D, TP) native dtype -- embeddings[pairs[:,0]].T tile
    e2_ref  : VMEM (D, TP) native dtype -- embeddings[pairs[:,1]].T tile
    sim_ref : VMEM (1, TP) f32          -- cosine similarity (lane dense)
    """
    e1 = e1_ref[...].astype(jnp.float32)
    e2 = e2_ref[...].astype(jnp.float32)
    dot = jnp.sum(e1 * e2, axis=0, keepdims=True)          # (1, TP)
    s1 = jnp.sum(e1 * e1, axis=0, keepdims=True)
    s2 = jnp.sum(e2 * e2, axis=0, keepdims=True)
    # one EUP rsqrt replaces two sqrts + a VALU divide
    sim_ref[...] = dot * lax.rsqrt(jnp.maximum(s1 * s2, eps_sq))


def _loss_kernel(temp_ref, np_ref, simc_ref, lblc_ref, simr_ref, lblr_ref,
                 out_ref, rank_ref, *, margin, hard_negative_mining):
    """Tiled hard-negative ranking + loss reduction.

    temp_ref : SMEM (1,1) f32     -- temperature
    np_ref   : SMEM (1,1) f32     -- true (un-padded) number of pairs
    simc_ref : VMEM (TJ,1) f32    -- competitor block of sims (column layout)
    lblc_ref : VMEM (TJ,1) f32    -- competitor block of labels
    simr_ref : VMEM (1,P) f32     -- full sims, lane-major (resident)
    lblr_ref : VMEM (1,P) f32     -- full labels, lane-major (resident)
    out_ref  : VMEM (1,1) f32     -- scalar loss (written on last step)
    rank_ref : VMEM (1,P) f32     -- rank accumulator scratch
    """
    j = pl.program_id(0)
    nj = pl.num_programs(0)

    if hard_negative_mining:
        @pl.when(j == 0)
        def _init():
            rank_ref[...] = jnp.zeros_like(rank_ref)

        tj = simc_ref.shape[0]
        p = simr_ref.shape[1]
        sim_row = simr_ref[...]                                   # (1, P)
        simc = simc_ref[...]                                      # (TJ, 1)
        lblc = lblc_ref[...]                                      # (TJ, 1)
        # only negatives compete; padding (label -1) never beats anything
        masked = jnp.where(lblc == 0.0, simc, _NEG_SENTINEL)      # (TJ, 1)
        row_idx = lax.broadcasted_iota(jnp.int32, (tj, 1), 0) + j * tj
        col_idx = lax.broadcasted_iota(jnp.int32, (1, p), 1)
        # competitor j beats pair i if sim_j > sim_i, ties broken by index
        beats = ((masked > sim_row) |
                 ((masked == sim_row) & (row_idx < col_idx)))     # (TJ, P)
        rank_ref[...] += jnp.sum(beats.astype(jnp.float32), axis=0,
                                 keepdims=True)

    @pl.when(j == nj - 1)
    def _finalize():
        temp = temp_ref[0, 0]
        true_p = np_ref[0, 0]
        sim = simr_ref[...]                                       # (1, P)
        labels = lblr_ref[...]                                    # (1, P)
        valid = labels >= 0.0                                     # padding = -1

        # ---- fallback branch (no mining / no negatives), padding excluded ---
        simple_terms = jnp.where(
            valid,
            (1.0 - labels) * sim * sim
            + labels * jnp.square(jnp.maximum(margin - sim, 0.0)),
            0.0)
        loss_simple = (jnp.sum(simple_terms, keepdims=True)
                       / jnp.maximum(true_p, 1.0))

        if not hard_negative_mining:
            out_ref[...] = loss_simple.astype(out_ref.dtype)
            return

        pos = labels == 1.0
        neg = labels == 0.0
        n_pos = jnp.sum(pos.astype(jnp.float32), keepdims=True)   # (1, 1)
        n_neg = jnp.sum(neg.astype(jnp.float32), keepdims=True)   # (1, 1)

        rank = rank_ref[...]                                      # (1, P)
        # k = min(n_neg // 2 + 1, n_neg)
        k = jnp.minimum(jnp.floor(n_neg * 0.5) + 1.0, n_neg)
        hard = neg & (rank < k)                                   # (1, P)
        n_hard = jnp.sum(hard.astype(jnp.float32), keepdims=True)

        scaled = sim / temp                                       # (1, P)
        # overflow-safe exp: shift by the max over the selected (pos|hard)
        # positions; padded pairs only appear inside where-selected branches.
        sel = pos | hard
        m = jnp.max(jnp.where(sel, scaled, -jnp.inf), keepdims=True)
        m = jnp.where(n_pos + n_hard > 0.0, m, 0.0)               # (1, 1)

        exp_shift = jnp.exp(scaled - m)                           # <=1 at sel
        s_hard = jnp.sum(jnp.where(hard, exp_shift, 0.0), keepdims=True)
        # -log(e^s / (e^s + S)) == log(e^(s-m) + S*e^-m) - (s - m)
        pos_terms = jnp.log(exp_shift + s_hard) - (scaled - m)
        pos_loss = (jnp.sum(jnp.where(pos, pos_terms, 0.0), keepdims=True)
                    / jnp.maximum(n_pos, 1.0))

        thresh = jnp.exp(-margin / temp)
        neg_terms = jnp.maximum(jnp.exp(scaled) - thresh, 0.0)
        neg_loss = (jnp.sum(jnp.where(hard, neg_terms, 0.0), keepdims=True)
                    / jnp.maximum(n_hard, 1.0))

        loss_hard = pos_loss + 0.5 * neg_loss
        out_ref[...] = jnp.where(n_neg > 0.0, loss_hard,
                                 loss_simple).astype(out_ref.dtype)


def improved_contrastive_loss(embeddings, pairs, log_temp, *, margin=0.5,
                              temperature=0.1, adaptive_temp=True,
                              hard_negative_mining=True, pair_tile=512,
                              rank_tile=256):
    """JAX/Pallas equivalent of ImprovedContrastiveLoss.forward."""
    P = pairs.shape[0]
    _, D = embeddings.shape
    itemsize = jnp.dtype(embeddings.dtype).itemsize

    # ---- stage-1 pair-tile selection (lane-dense, VMEM budgeted) ----
    tp = 128
    for cand in (1024, 512, 256, 128):
        if cand <= max(pair_tile, 128) and 4 * cand * D * itemsize <= _VMEM_TILE_BUDGET:
            tp = cand
            break
    p_ceil = _round_up(max(P, 1), 128)
    if p_ceil < tp:
        tp = p_ceil
    P_pad = _round_up(max(P, 1), tp)

    # ---- stage-2 competitor-tile selection (must divide P_pad) ----
    tj = rank_tile
    if tj <= 0 or tj % 8 != 0 or P_pad % tj != 0:
        tj = 128
    tj = min(tj, P_pad)

    idx1 = pairs[:, 0].astype(jnp.int32)
    idx2 = pairs[:, 1].astype(jnp.int32)
    labels = pairs[:, 2].astype(jnp.float32)
    pad = P_pad - P
    if pad:
        idx1 = jnp.concatenate([idx1, jnp.zeros((pad,), jnp.int32)])
        idx2 = jnp.concatenate([idx2, jnp.zeros((pad,), jnp.int32)])
        labels = jnp.concatenate([labels, jnp.full((pad,), -1.0, jnp.float32)])

    # Glue: the row gather stays in XLA (native dtype through gather + DMA;
    # cast to f32 happens in-register inside the kernel).
    # TODO(synk): move the gather in-kernel (scalar-prefetched indices +
    # VMEM-resident table or per-row DMA) to avoid the extra HBM round trip.
    emb_t = embeddings.T                            # (D, N)
    e1t = jnp.take(emb_t, idx1, axis=1)             # (D, P_pad)
    e2t = jnp.take(emb_t, idx2, axis=1)             # (D, P_pad)

    num_tiles = P_pad // tp
    stage1_bytes = (2 * 2 * tp * D * itemsize       # double-buffered inputs
                    + 2 * tp * D * 4                # in-kernel f32 casts
                    + 2 * 2 * tp * 4)               # double-buffered output
    vmem1 = int(min(max(2 * stage1_bytes, 8 << 20), 48 << 20))

    sims_row = pl.pallas_call(
        functools.partial(_sim_kernel, eps_sq=1e-16),
        out_shape=jax.ShapeDtypeStruct((1, P_pad), jnp.float32),
        grid=(num_tiles,),
        in_specs=[pl.BlockSpec((D, tp), lambda i: (0, i)),
                  pl.BlockSpec((D, tp), lambda i: (0, i))],
        out_specs=pl.BlockSpec((1, tp), lambda i: (0, i)),
        compiler_params=pltpu.CompilerParams(
            dimension_semantics=("parallel",),
            vmem_limit_bytes=vmem1),
    )(e1t, e2t)

    if adaptive_temp:
        temp = jnp.exp(jnp.asarray(log_temp, jnp.float32))
    else:
        temp = jnp.asarray(temperature, jnp.float32)
    temp_arr = temp.reshape(1, 1)
    true_p = jnp.full((1, 1), float(P), jnp.float32)

    sims_col = sims_row.reshape(P_pad, 1)           # competitor-axis layout
    labels_row = labels.reshape(1, P_pad)
    labels_col = labels.reshape(P_pad, 1)

    num_j = P_pad // tj
    stage2_bytes = (3 * tj * P_pad * 4              # (TJ,P) compare temporaries
                    + 8 * P_pad * 4                 # resident rows + rank scratch
                    + 4 * 2 * tj * 4)               # column blocks
    vmem2 = int(min(max(2 * stage2_bytes, 8 << 20), 48 << 20))

    loss_kernel = functools.partial(
        _loss_kernel, margin=float(margin),
        hard_negative_mining=bool(hard_negative_mining))
    out = pl.pallas_call(
        loss_kernel,
        out_shape=jax.ShapeDtypeStruct((1, 1), jnp.float32),
        grid=(num_j,),
        in_specs=[
            pl.BlockSpec(memory_space=pltpu.MemorySpace.SMEM),   # temperature
            pl.BlockSpec(memory_space=pltpu.MemorySpace.SMEM),   # true P
            pl.BlockSpec((tj, 1), lambda j: (j, 0)),             # sim col blocks
            pl.BlockSpec((tj, 1), lambda j: (j, 0)),             # label col blocks
            pl.BlockSpec((1, P_pad), lambda j: (0, 0)),          # resident sim row
            pl.BlockSpec((1, P_pad), lambda j: (0, 0)),          # resident label row
        ],
        out_specs=pl.BlockSpec((1, 1), lambda j: (0, 0)),
        scratch_shapes=[pltpu.VMEM((1, P_pad), jnp.float32)],
        compiler_params=pltpu.CompilerParams(
            dimension_semantics=("arbitrary",),
            vmem_limit_bytes=vmem2),
    )(temp_arr, true_p, sims_col, labels_col, sims_row, labels_row)
    return out[0, 0]


def _reference(embeddings, pairs, log_temp, *, margin=0.5, temperature=0.1,
               adaptive_temp=True, hard_negative_mining=True):
    """Pure-JAX (eager) transcription of the PyTorch forward for checking."""
    idx1, idx2 = pairs[:, 0], pairs[:, 1]
    lab = pairs[:, 2].astype(jnp.float32)
    e1, e2 = embeddings[idx1], embeddings[idx2]
    sim = jnp.sum(e1 * e2, axis=-1) / jnp.maximum(
        jnp.linalg.norm(e1, axis=-1) * jnp.linalg.norm(e2, axis=-1), 1e-8)
    if adaptive_temp:
        temp = jnp.exp(jnp.asarray(log_temp, jnp.float32))
    else:
        temp = jnp.asarray(temperature, jnp.float32)
    pos_mask = lab == 1.0
    neg_mask = lab == 0.0
    n_neg = int(jnp.sum(neg_mask))
    if hard_negative_mining and n_neg > 0:
        neg_sim = sim[neg_mask]
        k = min(n_neg // 2 + 1, n_neg)
        hard_local = jnp.argsort(-neg_sim)[:k]
        neg_positions = jnp.nonzero(neg_mask)[0]
        hard_positions = neg_positions[hard_local]
        hard_mask = jnp.zeros_like(neg_mask).at[hard_positions].set(True)
        pos_sim = sim[pos_mask] / temp
        hneg_sim = sim[hard_mask] / temp
        if pos_sim.size > 0:
            pos_loss = jnp.mean(-jnp.log(
                jnp.exp(pos_sim) / (jnp.exp(pos_sim) + jnp.sum(jnp.exp(hneg_sim)))))
        else:
            pos_loss = jnp.float32(0.0)
        if hneg_sim.size > 0:
            neg_loss = jnp.mean(jnp.maximum(
                jnp.exp(hneg_sim) - jnp.exp(jnp.float32(-margin) / temp), 0.0))
        else:
            neg_loss = jnp.float32(0.0)
        return pos_loss + 0.5 * neg_loss
    terms = (1.0 - lab) * sim ** 2 + lab * jnp.maximum(margin - sim, 0.0) ** 2
    return jnp.mean(terms)


if __name__ == "__main__":
    key = jax.random.PRNGKey(0)
    margin, temperature = 0.5, 0.1
    log_temp = jnp.float32(math.log(temperature))   # module init: log(temperature)

    # --- case 1: 16 nodes, 32-dim embeddings, 8 labelled pairs (mining on) ---
    N, D, P = 16, 32, 8
    k_emb, k_rest = jax.random.split(key)
    embeddings = jax.random.normal(k_emb, (N, D), dtype=jnp.float32)
    idx1 = jnp.arange(0, P, dtype=jnp.int32)
    idx2 = jnp.arange(P, 2 * P, dtype=jnp.int32)
    labels = jnp.array([1, 0, 1, 0, 0, 1, 0, 0], dtype=jnp.int32)
    pairs = jnp.stack([idx1, idx2, labels], axis=1)             # (P, 3)

    loss = improved_contrastive_loss(embeddings, pairs, log_temp,
                                     margin=margin, temperature=temperature,
                                     adaptive_temp=True,
                                     hard_negative_mining=True)
    loss = jax.block_until_ready(loss)
    ref = _reference(embeddings, pairs, log_temp, margin=margin,
                     adaptive_temp=True, hard_negative_mining=True)
    assert jnp.isfinite(loss), "loss is not finite"
    assert jnp.allclose(loss, ref, rtol=1e-3, atol=1e-3), (
        f"mismatch (mining): kernel={float(loss)} ref={float(ref)}")

    # --- case 2: same inputs, hard_negative_mining=False (simple branch) ---
    loss_s = improved_contrastive_loss(embeddings, pairs, log_temp,
                                       margin=margin, temperature=temperature,
                                       adaptive_temp=True,
                                       hard_negative_mining=False)
    loss_s = jax.block_until_ready(loss_s)
    ref_s = _reference(embeddings, pairs, log_temp, margin=margin,
                       adaptive_temp=True, hard_negative_mining=False)
    assert jnp.allclose(loss_s, ref_s, rtol=1e-3, atol=1e-3), (
        f"mismatch (simple): kernel={float(loss_s)} ref={float(ref_s)}")

    # --- case 3: multi-tile path (200 pairs, forced 128-wide tiles) ---
    N2, P2 = 64, 200
    k1, k2, k3, k4 = jax.random.split(k_rest, 4)
    emb2 = jax.random.normal(k1, (N2, D), dtype=jnp.float32)
    i1 = jax.random.randint(k2, (P2,), 0, N2, dtype=jnp.int32)
    i2 = jax.random.randint(k3, (P2,), 0, N2, dtype=jnp.int32)
    lab2 = (jax.random.uniform(k4, (P2,)) < 0.5).astype(jnp.int32)
    lab2 = lab2.at[0].set(1).at[1].set(0)           # ensure both classes exist
    pairs2 = jnp.stack([i1, i2, lab2], axis=1)

    loss2 = improved_contrastive_loss(emb2, pairs2, log_temp, margin=margin,
                                      temperature=temperature,
                                      adaptive_temp=True,
                                      hard_negative_mining=True,
                                      pair_tile=128, rank_tile=128)
    loss2 = jax.block_until_ready(loss2)
    ref2 = _reference(emb2, pairs2, log_temp, margin=margin,
                      adaptive_temp=True, hard_negative_mining=True)
    assert jnp.isfinite(loss2), "multi-tile loss is not finite"
    assert jnp.allclose(loss2, ref2, rtol=1e-3, atol=1e-3), (
        f"mismatch (multi-tile): kernel={float(loss2)} ref={float(ref2)}")

    print("KERNEL_OK")
</pallas_src>

<mosaic_0001>
module attributes {stable_mosaic.version = 11 : i64} {
  func.func @_sim_kernel(%arg0: i32, %arg1: memref<32x128xf32, #tpu.memory_space<vmem>>, %arg2: memref<32x128xf32, #tpu.memory_space<vmem>>, %arg3: memref<1x128xf32, #tpu.memory_space<vmem>>) attributes {dimension_semantics = [#tpu.dimension_semantics<parallel>], iteration_bounds = array<i64: 1>, scalar_prefetch = 0 : i64, scratch_operands = 0 : i64, tpu.core_type = #tpu.core_type<tc>, window_params = [{transform_indices = @transform_0, window_bounds = array<i64: 32, 128>}, {transform_indices = @transform_1, window_bounds = array<i64: 32, 128>}, {transform_indices = @transform_2, window_bounds = array<i64: 1, 128>}]} {
    %c0 = arith.constant 0 : index
    %c0_0 = arith.constant 0 : index
    %0 = vector.load %arg1[%c0, %c0_0] : memref<32x128xf32, #tpu.memory_space<vmem>>, vector<32x128xf32>
    %c0_1 = arith.constant 0 : index
    %c0_2 = arith.constant 0 : index
    %1 = vector.load %arg2[%c0_1, %c0_2] : memref<32x128xf32, #tpu.memory_space<vmem>>, vector<32x128xf32>
    %2 = arith.mulf %0, %1 : vector<32x128xf32>
    %cst = arith.constant dense<0.000000e+00> : vector<128xf32>
    %3 = vector.multi_reduction <add>, %2, %cst [0] : vector<32x128xf32> to vector<128xf32>
    %4 = vector.shape_cast %3 : vector<128xf32> to vector<1x128xf32>
    %5 = arith.mulf %0, %0 : vector<32x128xf32>
    %cst_3 = arith.constant dense<0.000000e+00> : vector<128xf32>
    %6 = vector.multi_reduction <add>, %5, %cst_3 [0] : vector<32x128xf32> to vector<128xf32>
    %7 = vector.shape_cast %6 : vector<128xf32> to vector<1x128xf32>
    %8 = arith.mulf %1, %1 : vector<32x128xf32>
    %cst_4 = arith.constant dense<0.000000e+00> : vector<128xf32>
    %9 = vector.multi_reduction <add>, %8, %cst_4 [0] : vector<32x128xf32> to vector<128xf32>
    %10 = vector.shape_cast %9 : vector<128xf32> to vector<1x128xf32>
    %11 = arith.mulf %7, %10 : vector<1x128xf32>
    %cst_5 = arith.constant 1.000000e-16 : f32
    %12 = vector.broadcast %cst_5 : f32 to vector<1x128xf32>
    %13 = arith.maximumf %11, %12 : vector<1x128xf32>
    %14 = math.rsqrt %13 : vector<1x128xf32>
    %15 = arith.mulf %4, %14 : vector<1x128xf32>
    %c0_6 = arith.constant 0 : index
    %c0_7 = arith.constant 0 : index
    %16 = vector.load %arg3[%c0_6, %c0_7] : memref<1x128xf32, #tpu.memory_space<vmem>>, vector<1x128xf32>
    tpu.vector_store %arg3[%c0_6, %c0_7], %15 {strides = array<i32>} : memref<1x128xf32, #tpu.memory_space<vmem>>, vector<1x128xf32>,
    return
  }
  func.func @transform_0(%arg0: i32) -> (i32, i32) {
    %c0_i32 = arith.constant 0 : i32
    %c0_i32_0 = arith.constant 0 : i32
    return %c0_i32, %arg0 : i32, i32
  }
  func.func @transform_1(%arg0: i32) -> (i32, i32) {
    %c0_i32 = arith.constant 0 : i32
    %c0_i32_0 = arith.constant 0 : i32
    return %c0_i32, %arg0 : i32, i32
  }
  func.func @transform_2(%arg0: i32) -> (i32, i32) {
    %c0_i32 = arith.constant 0 : i32
    %c0_i32_0 = arith.constant 0 : i32
    return %c0_i32, %arg0 : i32, i32
  }
}

</mosaic_0001>

<llo_original>
// kernel: tpu_custom_call.1
$region0: #{tpu_custom_call.1}
  #allocation0 [shape = 'u32[]', space=smem, size = 0x4, offset = 0x4, fixed_abs, tag = 'smem constant byte address 0x4 - core index']
  #allocation1 [shape = 'u32[144,128]{1,0:T(1,128)}', space=vmem, size = 0x12000, scoped, tag = 'internal scratch']
  %s0 = inlined_call_operand.hbm [shape: f32[32,128], index: 0, kind: input, shape index: {}]
  %s1 = inlined_call_operand.hbm [shape: f32[32,128], index: 1, kind: input, shape index: {}]
  %s2 = inlined_call_operand.hbm [shape: f32[1,128], index: 2, kind: output, shape index: {}]
  %s3 = sld [smem:[#allocation0]]
  $region26: #{tpu_custom_call.1} parent=0
    _
  %s5 = ssub.s32 1, %s3
  %s6 = scalar_select 0, %s5, %s3
  $region1: #{tpu_custom_call.1} parent=0
    #allocation2 [shape = 'u8[16384]{0}', space=vmem, size = 0x4000, scoped, tag = 'input window, operand 0, single buffered']
    #allocation3 [shape = 's32[1]{0}', space=sflag, size = 0x4, scoped, tag = 'scoped memory for tpu_custom_call.1']
    #allocation4 [shape = 's32[1]{0}', space=sflag, size = 0x4, scoped, tag = 'scoped memory for tpu_custom_call.1']
    #allocation5 [shape = 'u8[16384]{0}', space=vmem, size = 0x4000, scoped, tag = 'input window, operand 1, single buffered']
    #allocation6 [shape = 's32[1]{0}', space=sflag, size = 0x4, scoped, tag = 'scoped memory for tpu_custom_call.1']
    #allocation7 [shape = 'u8[512]{0}', space=vmem, size = 0x400, scoped, tag = 'output window, operand 0, single buffered']
    %7 = vsyncpa [#allocation3], 0
    %8 = vsyncpa [#allocation6], 0
    %9 = vsyncpa [#allocation4], 0
    // Predicated region
    $region2: #{tpu_custom_call.1} parent=1 // pred_check
      _
    $region3: #{tpu_custom_call.1} parent=1 // pred_check_branch
      %11 = sbr.rel (0) target = $region5
    $region4: #{tpu_custom_call.1} parent=1 // pred_region
      %s13 = ssub.s32 512, 512
      %14 = vsyncadd [#allocation3], %s13
      %s15 = sshll.u32 [#allocation2], 4
      %s16 = int_to_ptr.vmem [resolvable:$true] %s15
      %21 = dma.hbm_to_vmem [thread:$0]  %s0, 512, %s16, [#allocation3], 128, 128, 8
    $region5: #{tpu_custom_call.1} parent=1 // pred_fallthru
      _
    // Predicated region
    $region6: #{tpu_custom_call.1} parent=1 // pred_check
      _
    $region7: #{tpu_custom_call.1} parent=1 // pred_check_branch
      %23 = sbr.rel (0) target = $region9
    $region8: #{tpu_custom_call.1} parent=1 // pred_region
      %s25 = ssub.s32 512, 512
      %26 = vsyncadd [#allocation6], %s25
      %s27 = sshll.u32 [#allocation5], 4
      %s28 = int_to_ptr.vmem [resolvable:$true] %s27
      %33 = dma.hbm_to_vmem [thread:$0]  %s1, 512, %s28, [#allocation6], 128, 128, 8
    $region9: #{tpu_custom_call.1} parent=1 // pred_fallthru
      _
    // Predicated region
    $region10: #{tpu_custom_call.1} parent=1 // pred_check
      _
    $region11: #{tpu_custom_call.1} parent=1 // pred_check_branch
      %35 = sbr.rel (0) target = $region13
    $region12: #{tpu_custom_call.1} parent=1 // pred_region
      %36 = dma.done [#allocation3], 512
    $region13: #{tpu_custom_call.1} parent=1 // pred_fallthru
      _
    // Predicated region
    $region14: #{tpu_custom_call.1} parent=1 // pred_check
      _
    $region15: #{tpu_custom_call.1} parent=1 // pred_check_branch
      %38 = sbr.rel (0) target = $region17
    $region16: #{tpu_custom_call.1} parent=1 // pred_region
      %39 = dma.done [#allocation6], 512
    $region17: #{tpu_custom_call.1} parent=1 // pred_fallthru
      _
    %v40 = vld [vmem:[#allocation2] sm:$0xff]
    %v41 = vld [vmem:[#allocation2 + $0x8] sm:$0xff]
    %v42 = vld [vmem:[#allocation2 + $0x10] sm:$0xff]
    %v43 = vld [vmem:[#allocation2 + $0x18] sm:$0xff]
    %v44 = vld [vmem:[#allocation5] sm:$0xff]
    %v45 = vld [vmem:[#allocation5 + $0x8] sm:$0xff]
    %v46 = vld [vmem:[#allocation5 + $0x10] sm:$0xff]
    %v47 = vld [vmem:[#allocation5 + $0x18] sm:$0xff]
    %v48 = vmul.f32 %v40, %v44
    %v49 = vmul.f32 %v41, %v45
    %v50 = vmul.f32 %v42, %v46
    %v51 = vmul.f32 %v43, %v47
    %v52 = vadd.f32 %v48, %v49
    %v53 = vadd.f32 %v52, %v50
    %v54 = vadd.f32 %v53, %v51
    %v55 = vrot.slane %v54, 4
    %v56 = vadd.f32 %v54, %v55
    %v57 = vrot.slane %v56, 2
    %v58 = vadd.f32 %v56, %v57
    %v59 = vrot.slane %v58, 1
    %v60 = vadd.f32 %v58, %v59
    %v61 = vmul.f32 %v40, %v40
    %v62 = vmul.f32 %v41, %v41
    %v63 = vmul.f32 %v42, %v42
    %v64 = vmul.f32 %v43, %v43
    %v65 = vadd.f32 %v61, %v62
    %v66 = vadd.f32 %v65, %v63
    %v67 = vadd.f32 %v66, %v64
    %v68 = vrot.slane %v67, 4
    %v69 = vadd.f32 %v67, %v68
    %v70 = vrot.slane %v69, 2
    %v71 = vadd.f32 %v69, %v70
    %v72 = vrot.slane %v71, 1
    %v73 = vadd.f32 %v71, %v72
    %v74 = vmul.f32 %v44, %v44
    %v75 = vmul.f32 %v45, %v45
    %v76 = vmul.f32 %v46, %v46
    %v77 = vmul.f32 %v47, %v47
    %v78 = vadd.f32 %v74, %v75
    %v79 = vadd.f32 %v78, %v76
    %v80 = vadd.f32 %v79, %v77
    %v81 = vrot.slane %v80, 4
    %v82 = vadd.f32 %v80, %v81
    %v83 = vrot.slane %v82, 2
    %v84 = vadd.f32 %v82, %v83
    %v85 = vrot.slane %v84, 1
    %v86 = vadd.f32 %v84, %v85
    %v87 = vmul.f32 %v73, %v86
    %v88 = vmax.f32 %v87, 1e-16
    %v89 = vrsqrt.pop %v88
    %v90 = vmul.f32 %v60, %v89
    %91 = vst [vmem:[#allocation7] sm:$0x1] %v90
    // Predicated region
    $region18: #{tpu_custom_call.1} parent=1 // pred_check
      _
    $region19: #{tpu_custom_call.1} parent=1 // pred_check_branch
      %93 = sbr.rel (0) target = $region21
    $region20: #{tpu_custom_call.1} parent=1 // pred_region
      %s95 = ssub.s32 16, 16
      %96 = vsyncadd [#allocation4], %s95
      %s98 = sshll.u32 [#allocation7], 4
      %s99 = int_to_ptr.vmem [resolvable:$true] %s98
      %101 = dma.vmem_to_hbm [thread:$0]  %s99, 16, %s2, [#allocation4]
    $region21: #{tpu_custom_call.1} parent=1 // pred_fallthru
      _
    // Predicated region
    $region22: #{tpu_custom_call.1} parent=1 // pred_check
      _
    $region23: #{tpu_custom_call.1} parent=1 // pred_check_branch
      %103 = sbr.rel (0) target = $region25
    $region24: #{tpu_custom_call.1} parent=1 // pred_region
      %104 = dma.done [#allocation4], 16
    $region25: #{tpu_custom_call.1} parent=1 // pred_fallthru
      _
    %105 = vsyncpa [#allocation3], 1
    %106 = vsyncpa [#allocation6], 1
    %107 = vsyncpa [#allocation4], 1

</llo_original>
